<compile_context>
chip_gen: v5e
topology: v5e:2x2
jax: 0.10.0
libtpu: 0.0.40
codegen_flags: <defaults>
</compile_context>

<pallas_src>
import functools

import jax
import jax.numpy as jnp
from jax import lax
from jax.experimental import pallas as pl
from jax.experimental.pallas import tpu as pltpu


def _self_attention_kernel(x_ref, wk_ref, wq_ref, wv_ref, o_ref,
                           q_sc, v_sc, o_acc,
                           *, nhead, dv, tq, softmax_dtype):
    """Grid = (B, S // TQ).

    x_ref holds the full (1, S, I) sequence of the current batch; the
    query-row tile is sliced out of it (no duplicate x stream).  q/v
    projections for the whole sequence are computed once per batch into
    persistent per-head VMEM scratch and reused by every query tile.
    """
    n = pl.program_id(1)

    # --- once per batch: project q and v for the full sequence into scratch.
    @pl.when(n == 0)
    def _project_qv():
        xs = x_ref[0]                                        # (S, I), native dtype
        for h in range(nhead):                               # static, small
            q_sc[h] = jnp.dot(xs, wq_ref[h],
                              preferred_element_type=jnp.float32
                              ).astype(q_sc.dtype)           # (S, dk)
            v_sc[h] = jnp.dot(xs, wv_ref[h],
                              preferred_element_type=jnp.float32
                              ).astype(v_sc.dtype)           # (S, dv)

    # --- per-step: query-row tile sliced from the resident full-S block.
    start = pl.multiple_of(n * tq, tq)                       # tq multiple of 8
    xq = x_ref[0, pl.ds(start, tq), :]                       # (TQ, I)

    for h in range(nhead):
        # k projection for this tile/head (Wk already carries 1/sqrt(dk)).
        kh = jnp.dot(xq, wk_ref[h],
                     preferred_element_type=jnp.float32).astype(xq.dtype)  # (TQ, dk)
        qh = q_sc[h]                                         # (S, dk)
        vh = v_sc[h]                                         # (S, dv)

        # s[n, m] = sum_d kh[n, d] * qh[m, d]   (contract last dims, no .T)
        s = lax.dot_general(kh, qh, (((1,), (1,)), ((), ())),
                            preferred_element_type=jnp.float32)            # (TQ, S)
        # torch.softmax(..., dim=-2) over m == softmax over axis -1 of s[n, m]
        s = s - jnp.max(s, axis=-1, keepdims=True)
        p = jnp.exp(s.astype(softmax_dtype))
        p = p * pl.reciprocal(jnp.sum(p, axis=-1, keepdims=True), approx=True)

        # head result into its static lane slice of the f32 output scratch.
        o_acc[:, h * dv:(h + 1) * dv] = jnp.dot(
            p.astype(vh.dtype), vh, preferred_element_type=jnp.float32)    # (TQ, dv)

    # Single lane-dense store of the full (TQ, H*dv) output tile.
    o_ref[0] = o_acc[...].astype(o_ref.dtype)


def _device_kind():
    try:
        return jax.devices()[0].device_kind.lower()
    except Exception:
        return ""


def _pick_query_tile(S, kind):
    # v6e/v7x MXUs are 2x256x256 and the ~0.35us per-grid-step overhead
    # favours big tiles; v5e (4x128x128 MXU, 1 vst slot, weakest HBM) prefers
    # 128 to bound the live (TQ, S) score footprint; v7x's 64 MiB VMEM
    # prefers 256 over 512.
    if "v5" in kind:
        prefs = (128, 256, 64, 32, 16, 8)
    elif "v7" in kind or "7x" in kind:
        prefs = (256, 128, 512, 64, 32, 16, 8)
    else:  # v6e and default (128 MiB VMEM)
        prefs = (512, 256, 128, 64, 32, 16, 8)
    for t in prefs:
        if t <= S and S % t == 0:
            return t
    return S  # fallback: full sequence (always a legal block)


def _resident_vmem_bytes(S, I, KQ, V, TQ, itemsize):
    x_blk = 2 * S * I * itemsize                 # double-buffered x block
    weights = 2 * I * (2 * KQ + V) * itemsize    # constant blocks, 2 buffers
    out_blk = 2 * TQ * V * itemsize
    qv_sc = S * (KQ + V) * itemsize              # persistent q/v scratch
    o_sc = TQ * V * 4
    scores = 3 * TQ * S * 4                      # live (TQ, S) f32 tiles
    return x_blk + weights + out_blk + qv_sc + o_sc + scores


def _vmem_limit_bytes(kind, resident_bytes):
    # Physical VMEM: 64 MiB/TensorCore on v7x, 128 MiB on v5e/v6e.
    phys = (64 << 20) if ("v7" in kind or "7x" in kind) else (128 << 20)
    cap = int(phys * 3 // 4)                     # 48 MiB (v7x) / 96 MiB (v5e,v6e)
    # At least 32 MiB (v5e default scoped limit is 16 MiB), but never more
    # than the kernel can plausibly use — keeps small problems conservative.
    want = max(32 << 20, 4 * resident_bytes)
    return min(cap, want)


def self_attention_pallas(x, wk, wq, wv, nhead):
    """x: (B, S, I); wk/wq: (KQ, I); wv: (V, I). Returns (B, S, V)."""
    B, S, I = x.shape
    KQ = wk.shape[0]
    V = wv.shape[0]
    assert KQ % nhead == 0 and V % nhead == 0
    dk = KQ // nhead
    dv = V // nhead

    kind = _device_kind()
    TQ = _pick_query_tile(S, kind)

    # Pre-split weights per head (leading head axis -> leading-axis indexing in
    # the kernel, no lane-crossing slices), pre-transpose to (I, d), fold the
    # 1/sqrt(dk) softmax scale into Wk, match the activation dtype for the MXU.
    scale = 1.0 / (dk ** 0.5)
    wk_h = jnp.transpose((wk * scale).reshape(nhead, dk, I), (0, 2, 1)).astype(x.dtype)
    wq_h = jnp.transpose(wq.reshape(nhead, dk, I), (0, 2, 1)).astype(x.dtype)
    wv_h = jnp.transpose(wv.reshape(nhead, dv, I), (0, 2, 1)).astype(x.dtype)

    # bf16 softmax only where the EUP/VPU have a bf16 path (v6e/v7x) and the
    # values are bf16 anyway; exact f32 otherwise (including this f32 test).
    bf16_ok = not any(g in kind for g in ("v2", "v3", "v4", "v5"))
    softmax_dtype = (jnp.bfloat16
                     if (x.dtype == jnp.bfloat16 and bf16_ok) else jnp.float32)

    resident = _resident_vmem_bytes(S, I, KQ, V, TQ, jnp.dtype(x.dtype).itemsize)

    kernel = functools.partial(_self_attention_kernel, nhead=nhead, dv=dv,
                               tq=TQ, softmax_dtype=softmax_dtype)

    return pl.pallas_call(
        kernel,
        out_shape=jax.ShapeDtypeStruct((B, S, V), x.dtype),
        grid_spec=pltpu.PrefetchScalarGridSpec(
            num_scalar_prefetch=0,
            grid=(B, S // TQ),
            in_specs=[
                # single x stream: full sequence of the current batch; the
                # query-row tile is sliced from it in-kernel.
                pl.BlockSpec((1, S, I), lambda b, n: (b, 0, 0)),
                # per-head weights; constant block index => DMA'd once.
                pl.BlockSpec((nhead, I, dk), lambda b, n: (0, 0, 0)),
                pl.BlockSpec((nhead, I, dk), lambda b, n: (0, 0, 0)),
                pl.BlockSpec((nhead, I, dv), lambda b, n: (0, 0, 0)),
            ],
            out_specs=pl.BlockSpec((1, TQ, V), lambda b, n: (b, n, 0)),
            scratch_shapes=[
                pltpu.VMEM((nhead, S, dk), x.dtype),   # q, all heads, full S
                pltpu.VMEM((nhead, S, dv), x.dtype),   # v, all heads, full S
                pltpu.VMEM((TQ, V), jnp.float32),      # per-tile output assembly
            ],
        ),
        compiler_params=pltpu.CompilerParams(
            # Query-tile axis is 'arbitrary' so the q/v scratch legally
            # carries across steps; batch axis 'parallel' for megacore/v7x.
            dimension_semantics=("parallel", "arbitrary"),
            vmem_limit_bytes=_vmem_limit_bytes(kind, resident)),
    )(x, wk_h, wq_h, wv_h)


def self_attention_ref(x, wk, wq, wv, nhead):
    """Pure-JAX reference matching the PyTorch forward exactly."""
    B, S, I = x.shape
    k = (x @ wk.T).reshape(B, S, nhead, -1)
    q = (x @ wq.T).reshape(B, S, nhead, -1)
    v = (x @ wv.T).reshape(B, S, nhead, -1)
    attn = jax.nn.softmax(
        jnp.einsum('bnhd,bmhd->bnmh', k, q) / (k.shape[-1] ** 0.5), axis=-2)
    out = jnp.einsum('bnmh,bmhd->bnhd', attn, v)
    return out.reshape(B, S, -1)


if __name__ == "__main__":
    # Small deterministic config: batch=2, seq=8, i=32, kq=32, v=32, nhead=4.
    B, S, I = 2, 8, 32
    KQ, V, NHEAD = 32, 32, 4

    key = jax.random.PRNGKey(0)
    kx, kk, kq_, kv = jax.random.split(key, 4)
    x = jax.random.normal(kx, (B, S, I), dtype=jnp.float32)
    # nn.Linear-style deterministic init: uniform(-1/sqrt(in), 1/sqrt(in))
    bound = 1.0 / (I ** 0.5)
    wk = jax.random.uniform(kk, (KQ, I), jnp.float32, -bound, bound)
    wq = jax.random.uniform(kq_, (KQ, I), jnp.float32, -bound, bound)
    wv = jax.random.uniform(kv, (V, I), jnp.float32, -bound, bound)

    out = self_attention_pallas(x, wk, wq, wv, NHEAD)
    out = jax.block_until_ready(out)

    ref = self_attention_ref(x, wk, wq, wv, NHEAD)
    assert out.shape == (B, S, V), out.shape
    # Tolerance loosened slightly vs. pure-f32 because the softmax denominator
    # uses the EUP approximate reciprocal (pl.reciprocal(..., approx=True)).
    assert jnp.allclose(out, ref, atol=2e-3, rtol=2e-3), \
        float(jnp.max(jnp.abs(out - ref)))

    print("KERNEL_OK")
</pallas_src>

<mosaic_0001>
module attributes {stable_mosaic.version = 11 : i64} {
  func.func @_self_attention_kernel(%arg0: i32, %arg1: i32, %arg2: memref<1x8x32xf32, #tpu.memory_space<vmem>>, %arg3: memref<4x32x8xf32, #tpu.memory_space<vmem>>, %arg4: memref<4x32x8xf32, #tpu.memory_space<vmem>>, %arg5: memref<4x32x8xf32, #tpu.memory_space<vmem>>, %arg6: memref<1x8x32xf32, #tpu.memory_space<vmem>>, %arg7: memref<4x8x8xf32, #tpu.memory_space<vmem>>, %arg8: memref<4x8x8xf32, #tpu.memory_space<vmem>>, %arg9: memref<8x32xf32, #tpu.memory_space<vmem>>) attributes {dimension_semantics = [#tpu.dimension_semantics<parallel>, #tpu.dimension_semantics<arbitrary>], iteration_bounds = array<i64: 2, 1>, scalar_prefetch = 0 : i64, scratch_operands = 3 : i64, tpu.core_type = #tpu.core_type<tc>, window_params = [{transform_indices = @transform_0, window_bounds = array<i64: 1, 8, 32>}, {pipeline_mode = #tpu.pipeline_mode<synchronous>, transform_indices = @transform_1, window_bounds = array<i64: 4, 32, 8>}, {pipeline_mode = #tpu.pipeline_mode<synchronous>, transform_indices = @transform_2, window_bounds = array<i64: 4, 32, 8>}, {pipeline_mode = #tpu.pipeline_mode<synchronous>, transform_indices = @transform_3, window_bounds = array<i64: 4, 32, 8>}, {transform_indices = @transform_4, window_bounds = array<i64: 1, 8, 32>}]} {
    %c0_i32 = arith.constant 0 : i32
    %0 = arith.cmpi eq, %arg1, %c0_i32 : i32
    %1 = arith.extui %0 : i1 to i32
    %c0_i32_0 = arith.constant 0 : i32
    %2 = arith.cmpi ne, %1, %c0_i32_0 : i32
    scf.if %2 {
      %c0_64 = arith.constant 0 : index
      %c0_65 = arith.constant 0 : index
      %c0_66 = arith.constant 0 : index
      %92 = vector.load %arg2[%c0_64, %c0_65, %c0_66] : memref<1x8x32xf32, #tpu.memory_space<vmem>>, vector<1x8x32xf32>
      %93 = vector.shape_cast %92 : vector<1x8x32xf32> to vector<8x32xf32>
      %c0_67 = arith.constant 0 : index
      %c0_68 = arith.constant 0 : index
      %c0_69 = arith.constant 0 : index
      %94 = vector.load %arg4[%c0_67, %c0_68, %c0_69] : memref<4x32x8xf32, #tpu.memory_space<vmem>>, vector<1x32x8xf32>
      %95 = vector.shape_cast %94 : vector<1x32x8xf32> to vector<32x8xf32>
      %cst_70 = arith.constant dense<0.000000e+00> : vector<8x8xf32>
      %96 = tpu.matmul %93, %95, %cst_70 {dimension_numbers = #tpu.dot_dimension_numbers<[1], [0], [0], [1], [0, 0, 1, 1], [], []>} : vector<8x32xf32>, vector<32x8xf32>, vector<8x8xf32> -> vector<8x8xf32>
      %c0_71 = arith.constant 0 : index
      %c0_72 = arith.constant 0 : index
      %c0_73 = arith.constant 0 : index
      %97 = vector.load %arg7[%c0_71, %c0_72, %c0_73] : memref<4x8x8xf32, #tpu.memory_space<vmem>>, vector<1x8x8xf32>
      %98 = vector.shape_cast %97 : vector<1x8x8xf32> to vector<8x8xf32>
      %99 = vector.shape_cast %96 : vector<8x8xf32> to vector<1x8x8xf32>
      tpu.vector_store %arg7[%c0_71, %c0_72, %c0_73], %99 {strides = array<i32>} : memref<4x8x8xf32, #tpu.memory_space<vmem>>, vector<1x8x8xf32>,
      %c0_74 = arith.constant 0 : index
      %c0_75 = arith.constant 0 : index
      %c0_76 = arith.constant 0 : index
      %100 = vector.load %arg5[%c0_74, %c0_75, %c0_76] : memref<4x32x8xf32, #tpu.memory_space<vmem>>, vector<1x32x8xf32>
      %101 = vector.shape_cast %100 : vector<1x32x8xf32> to vector<32x8xf32>
      %cst_77 = arith.constant dense<0.000000e+00> : vector<8x8xf32>
      %102 = tpu.matmul %93, %101, %cst_77 {dimension_numbers = #tpu.dot_dimension_numbers<[1], [0], [0], [1], [0, 0, 1, 1], [], []>} : vector<8x32xf32>, vector<32x8xf32>, vector<8x8xf32> -> vector<8x8xf32>
      %c0_78 = arith.constant 0 : index
      %c0_79 = arith.constant 0 : index
      %c0_80 = arith.constant 0 : index
      %103 = vector.load %arg8[%c0_78, %c0_79, %c0_80] : memref<4x8x8xf32, #tpu.memory_space<vmem>>, vector<1x8x8xf32>
      %104 = vector.shape_cast %103 : vector<1x8x8xf32> to vector<8x8xf32>
      %105 = vector.shape_cast %102 : vector<8x8xf32> to vector<1x8x8xf32>
      tpu.vector_store %arg8[%c0_78, %c0_79, %c0_80], %105 {strides = array<i32>} : memref<4x8x8xf32, #tpu.memory_space<vmem>>, vector<1x8x8xf32>,
      %c1_81 = arith.constant 1 : index
      %c0_82 = arith.constant 0 : index
      %c0_83 = arith.constant 0 : index
      %106 = vector.load %arg4[%c1_81, %c0_82, %c0_83] : memref<4x32x8xf32, #tpu.memory_space<vmem>>, vector<1x32x8xf32>
      %107 = vector.shape_cast %106 : vector<1x32x8xf32> to vector<32x8xf32>
      %cst_84 = arith.constant dense<0.000000e+00> : vector<8x8xf32>
      %108 = tpu.matmul %93, %107, %cst_84 {dimension_numbers = #tpu.dot_dimension_numbers<[1], [0], [0], [1], [0, 0, 1, 1], [], []>} : vector<8x32xf32>, vector<32x8xf32>, vector<8x8xf32> -> vector<8x8xf32>
      %c1_85 = arith.constant 1 : index
      %c0_86 = arith.constant 0 : index
      %c0_87 = arith.constant 0 : index
      %109 = vector.load %arg7[%c1_85, %c0_86, %c0_87] : memref<4x8x8xf32, #tpu.memory_space<vmem>>, vector<1x8x8xf32>
      %110 = vector.shape_cast %109 : vector<1x8x8xf32> to vector<8x8xf32>
      %111 = vector.shape_cast %108 : vector<8x8xf32> to vector<1x8x8xf32>
      tpu.vector_store %arg7[%c1_85, %c0_86, %c0_87], %111 {strides = array<i32>} : memref<4x8x8xf32, #tpu.memory_space<vmem>>, vector<1x8x8xf32>,
      %c1_88 = arith.constant 1 : index
      %c0_89 = arith.constant 0 : index
      %c0_90 = arith.constant 0 : index
      %112 = vector.load %arg5[%c1_88, %c0_89, %c0_90] : memref<4x32x8xf32, #tpu.memory_space<vmem>>, vector<1x32x8xf32>
      %113 = vector.shape_cast %112 : vector<1x32x8xf32> to vector<32x8xf32>
      %cst_91 = arith.constant dense<0.000000e+00> : vector<8x8xf32>
      %114 = tpu.matmul %93, %113, %cst_91 {dimension_numbers = #tpu.dot_dimension_numbers<[1], [0], [0], [1], [0, 0, 1, 1], [], []>} : vector<8x32xf32>, vector<32x8xf32>, vector<8x8xf32> -> vector<8x8xf32>
      %c1_92 = arith.constant 1 : index
      %c0_93 = arith.constant 0 : index
      %c0_94 = arith.constant 0 : index
      %115 = vector.load %arg8[%c1_92, %c0_93, %c0_94] : memref<4x8x8xf32, #tpu.memory_space<vmem>>, vector<1x8x8xf32>
      %116 = vector.shape_cast %115 : vector<1x8x8xf32> to vector<8x8xf32>
      %117 = vector.shape_cast %114 : vector<8x8xf32> to vector<1x8x8xf32>
      tpu.vector_store %arg8[%c1_92, %c0_93, %c0_94], %117 {strides = array<i32>} : memref<4x8x8xf32, #tpu.memory_space<vmem>>, vector<1x8x8xf32>,
      %c2_95 = arith.constant 2 : index
      %c0_96 = arith.constant 0 : index
      %c0_97 = arith.constant 0 : index
      %118 = vector.load %arg4[%c2_95, %c0_96, %c0_97] : memref<4x32x8xf32, #tpu.memory_space<vmem>>, vector<1x32x8xf32>
      %119 = vector.shape_cast %118 : vector<1x32x8xf32> to vector<32x8xf32>
      %cst_98 = arith.constant dense<0.000000e+00> : vector<8x8xf32>
      %120 = tpu.matmul %93, %119, %cst_98 {dimension_numbers = #tpu.dot_dimension_numbers<[1], [0], [0], [1], [0, 0, 1, 1], [], []>} : vector<8x32xf32>, vector<32x8xf32>, vector<8x8xf32> -> vector<8x8xf32>
      %c2_99 = arith.constant 2 : index
      %c0_100 = arith.constant 0 : index
      %c0_101 = arith.constant 0 : index
      %121 = vector.load %arg7[%c2_99, %c0_100, %c0_101] : memref<4x8x8xf32, #tpu.memory_space<vmem>>, vector<1x8x8xf32>
      %122 = vector.shape_cast %121 : vector<1x8x8xf32> to vector<8x8xf32>
      %123 = vector.shape_cast %120 : vector<8x8xf32> to vector<1x8x8xf32>
      tpu.vector_store %arg7[%c2_99, %c0_100, %c0_101], %123 {strides = array<i32>} : memref<4x8x8xf32, #tpu.memory_space<vmem>>, vector<1x8x8xf32>,
      %c2_102 = arith.constant 2 : index
      %c0_103 = arith.constant 0 : index
      %c0_104 = arith.constant 0 : index
      %124 = vector.load %arg5[%c2_102, %c0_103, %c0_104] : memref<4x32x8xf32, #tpu.memory_space<vmem>>, vector<1x32x8xf32>
      %125 = vector.shape_cast %124 : vector<1x32x8xf32> to vector<32x8xf32>
      %cst_105 = arith.constant dense<0.000000e+00> : vector<8x8xf32>
      %126 = tpu.matmul %93, %125, %cst_105 {dimension_numbers = #tpu.dot_dimension_numbers<[1], [0], [0], [1], [0, 0, 1, 1], [], []>} : vector<8x32xf32>, vector<32x8xf32>, vector<8x8xf32> -> vector<8x8xf32>
      %c2_106 = arith.constant 2 : index
      %c0_107 = arith.constant 0 : index
      %c0_108 = arith.constant 0 : index
      %127 = vector.load %arg8[%c2_106, %c0_107, %c0_108] : memref<4x8x8xf32, #tpu.memory_space<vmem>>, vector<1x8x8xf32>
      %128 = vector.shape_cast %127 : vector<1x8x8xf32> to vector<8x8xf32>
      %129 = vector.shape_cast %126 : vector<8x8xf32> to vector<1x8x8xf32>
      tpu.vector_store %arg8[%c2_106, %c0_107, %c0_108], %129 {strides = array<i32>} : memref<4x8x8xf32, #tpu.memory_space<vmem>>, vector<1x8x8xf32>,
      %c3_109 = arith.constant 3 : index
      %c0_110 = arith.constant 0 : index
      %c0_111 = arith.constant 0 : index
      %130 = vector.load %arg4[%c3_109, %c0_110, %c0_111] : memref<4x32x8xf32, #tpu.memory_space<vmem>>, vector<1x32x8xf32>
      %131 = vector.shape_cast %130 : vector<1x32x8xf32> to vector<32x8xf32>
      %cst_112 = arith.constant dense<0.000000e+00> : vector<8x8xf32>
      %132 = tpu.matmul %93, %131, %cst_112 {dimension_numbers = #tpu.dot_dimension_numbers<[1], [0], [0], [1], [0, 0, 1, 1], [], []>} : vector<8x32xf32>, vector<32x8xf32>, vector<8x8xf32> -> vector<8x8xf32>
      %c3_113 = arith.constant 3 : index
      %c0_114 = arith.constant 0 : index
      %c0_115 = arith.constant 0 : index
      %133 = vector.load %arg7[%c3_113, %c0_114, %c0_115] : memref<4x8x8xf32, #tpu.memory_space<vmem>>, vector<1x8x8xf32>
      %134 = vector.shape_cast %133 : vector<1x8x8xf32> to vector<8x8xf32>
      %135 = vector.shape_cast %132 : vector<8x8xf32> to vector<1x8x8xf32>
      tpu.vector_store %arg7[%c3_113, %c0_114, %c0_115], %135 {strides = array<i32>} : memref<4x8x8xf32, #tpu.memory_space<vmem>>, vector<1x8x8xf32>,
      %c3_116 = arith.constant 3 : index
      %c0_117 = arith.constant 0 : index
      %c0_118 = arith.constant 0 : index
      %136 = vector.load %arg5[%c3_116, %c0_117, %c0_118] : memref<4x32x8xf32, #tpu.memory_space<vmem>>, vector<1x32x8xf32>
      %137 = vector.shape_cast %136 : vector<1x32x8xf32> to vector<32x8xf32>
      %cst_119 = arith.constant dense<0.000000e+00> : vector<8x8xf32>
      %138 = tpu.matmul %93, %137, %cst_119 {dimension_numbers = #tpu.dot_dimension_numbers<[1], [0], [0], [1], [0, 0, 1, 1], [], []>} : vector<8x32xf32>, vector<32x8xf32>, vector<8x8xf32> -> vector<8x8xf32>
      %c3_120 = arith.constant 3 : index
      %c0_121 = arith.constant 0 : index
      %c0_122 = arith.constant 0 : index
      %139 = vector.load %arg8[%c3_120, %c0_121, %c0_122] : memref<4x8x8xf32, #tpu.memory_space<vmem>>, vector<1x8x8xf32>
      %140 = vector.shape_cast %139 : vector<1x8x8xf32> to vector<8x8xf32>
      %141 = vector.shape_cast %138 : vector<8x8xf32> to vector<1x8x8xf32>
      tpu.vector_store %arg8[%c3_120, %c0_121, %c0_122], %141 {strides = array<i32>} : memref<4x8x8xf32, #tpu.memory_space<vmem>>, vector<1x8x8xf32>,
    } else {
    }
    %c8_i32 = arith.constant 8 : i32
    %3 = arith.muli %arg1, %c8_i32 : i32
    %4 = tpu.assume_multiple %3, 8 : i32
    %c0 = arith.constant 0 : index
    %5 = arith.index_cast %4 : i32 to index
    %c0_1 = arith.constant 0 : index
    %6 = vector.load %arg2[%c0, %5, %c0_1] : memref<1x8x32xf32, #tpu.memory_space<vmem>>, vector<1x8x32xf32>
    %7 = vector.shape_cast %6 : vector<1x8x32xf32> to vector<8x32xf32>
    %c0_2 = arith.constant 0 : index
    %c0_3 = arith.constant 0 : index
    %c0_4 = arith.constant 0 : index
    %8 = vector.load %arg3[%c0_2, %c0_3, %c0_4] : memref<4x32x8xf32, #tpu.memory_space<vmem>>, vector<1x32x8xf32>
    %9 = vector.shape_cast %8 : vector<1x32x8xf32> to vector<32x8xf32>
    %cst = arith.constant dense<0.000000e+00> : vector<8x8xf32>
    %10 = tpu.matmul %7, %9, %cst {dimension_numbers = #tpu.dot_dimension_numbers<[1], [0], [0], [1], [0, 0, 1, 1], [], []>} : vector<8x32xf32>, vector<32x8xf32>, vector<8x8xf32> -> vector<8x8xf32>
    %c0_5 = arith.constant 0 : index
    %c0_6 = arith.constant 0 : index
    %c0_7 = arith.constant 0 : index
    %11 = vector.load %arg7[%c0_5, %c0_6, %c0_7] : memref<4x8x8xf32, #tpu.memory_space<vmem>>, vector<1x8x8xf32>
    %12 = vector.shape_cast %11 : vector<1x8x8xf32> to vector<8x8xf32>
    %c0_8 = arith.constant 0 : index
    %c0_9 = arith.constant 0 : index
    %c0_10 = arith.constant 0 : index
    %13 = vector.load %arg8[%c0_8, %c0_9, %c0_10] : memref<4x8x8xf32, #tpu.memory_space<vmem>>, vector<1x8x8xf32>
    %14 = vector.shape_cast %13 : vector<1x8x8xf32> to vector<8x8xf32>
    %cst_11 = arith.constant dense<0.000000e+00> : vector<8x8xf32>
    %15 = tpu.matmul %10, %12, %cst_11 {dimension_numbers = #tpu.dot_dimension_numbers<[1], [1], [0], [0], [0, 0, 1, 0], [], []>} : vector<8x8xf32>, vector<8x8xf32>, vector<8x8xf32> -> vector<8x8xf32>
    %cst_12 = arith.constant dense<0xFF800000> : vector<8xf32>
    %16 = vector.multi_reduction <maximumf>, %15, %cst_12 [1] : vector<8x8xf32> to vector<8xf32>
    %17 = vector.shape_cast %16 : vector<8xf32> to vector<8x1xf32>
    %18 = vector.broadcast %17 : vector<8x1xf32> to vector<8x8xf32>
    %19 = arith.subf %15, %18 : vector<8x8xf32>
    %20 = math.exp %19 : vector<8x8xf32>
    %cst_13 = arith.constant dense<0.000000e+00> : vector<8xf32>
    %21 = vector.multi_reduction <add>, %20, %cst_13 [1] : vector<8x8xf32> to vector<8xf32>
    %22 = vector.shape_cast %21 : vector<8xf32> to vector<8x1xf32>
    %23 = tpu.reciprocal %22 {approx = true} : vector<8x1xf32> -> vector<8x1xf32>
    %24 = vector.broadcast %23 : vector<8x1xf32> to vector<8x8xf32>
    %25 = arith.mulf %20, %24 : vector<8x8xf32>
    %cst_14 = arith.constant dense<0.000000e+00> : vector<8x8xf32>
    %26 = tpu.matmul %25, %14, %cst_14 {dimension_numbers = #tpu.dot_dimension_numbers<[1], [0], [0], [1], [0, 0, 1, 1], [], []>} : vector<8x8xf32>, vector<8x8xf32>, vector<8x8xf32> -> vector<8x8xf32>
    %c0_15 = arith.constant 0 : index
    %c0_16 = arith.constant 0 : index
    %27 = vector.load %arg9[%c0_15, %c0_16] : memref<8x32xf32, #tpu.memory_space<vmem>>, vector<8x8xf32>
    tpu.vector_store %arg9[%c0_15, %c0_16], %26 {strides = array<i32>} : memref<8x32xf32, #tpu.memory_space<vmem>>, vector<8x8xf32>,
    %c1 = arith.constant 1 : index
    %c0_17 = arith.constant 0 : index
    %c0_18 = arith.constant 0 : index
    %28 = vector.load %arg3[%c1, %c0_17, %c0_18] : memref<4x32x8xf32, #tpu.memory_space<vmem>>, vector<1x32x8xf32>
    %29 = vector.shape_cast %28 : vector<1x32x8xf32> to vector<32x8xf32>
    %cst_19 = arith.constant dense<0.000000e+00> : vector<8x8xf32>
    %30 = tpu.matmul %7, %29, %cst_19 {dimension_numbers = #tpu.dot_dimension_numbers<[1], [0], [0], [1], [0, 0, 1, 1], [], []>} : vector<8x32xf32>, vector<32x8xf32>, vector<8x8xf32> -> vector<8x8xf32>
    %c1_20 = arith.constant 1 : index
    %c0_21 = arith.constant 0 : index
    %c0_22 = arith.constant 0 : index
    %31 = vector.load %arg7[%c1_20, %c0_21, %c0_22] : memref<4x8x8xf32, #tpu.memory_space<vmem>>, vector<1x8x8xf32>
    %32 = vector.shape_cast %31 : vector<1x8x8xf32> to vector<8x8xf32>
    %c1_23 = arith.constant 1 : index
    %c0_24 = arith.constant 0 : index
    %c0_25 = arith.constant 0 : index
    %33 = vector.load %arg8[%c1_23, %c0_24, %c0_25] : memref<4x8x8xf32, #tpu.memory_space<vmem>>, vector<1x8x8xf32>
    %34 = vector.shape_cast %33 : vector<1x8x8xf32> to vector<8x8xf32>
    %cst_26 = arith.constant dense<0.000000e+00> : vector<8x8xf32>
    %35 = tpu.matmul %30, %32, %cst_26 {dimension_numbers = #tpu.dot_dimension_numbers<[1], [1], [0], [0], [0, 0, 1, 0], [], []>} : vector<8x8xf32>, vector<8x8xf32>, vector<8x8xf32> -> vector<8x8xf32>
    %cst_27 = arith.constant dense<0xFF800000> : vector<8xf32>
    %36 = vector.multi_reduction <maximumf>, %35, %cst_27 [1] : vector<8x8xf32> to vector<8xf32>
    %37 = vector.shape_cast %36 : vector<8xf32> to vector<8x1xf32>
    %38 = vector.broadcast %37 : vector<8x1xf32> to vector<8x8xf32>
    %39 = arith.subf %35, %38 : vector<8x8xf32>
    %40 = math.exp %39 : vector<8x8xf32>
    %cst_28 = arith.constant dense<0.000000e+00> : vector<8xf32>
    %41 = vector.multi_reduction <add>, %40, %cst_28 [1] : vector<8x8xf32> to vector<8xf32>
    %42 = vector.shape_cast %41 : vector<8xf32> to vector<8x1xf32>
    %43 = tpu.reciprocal %42 {approx = true} : vector<8x1xf32> -> vector<8x1xf32>
    %44 = vector.broadcast %43 : vector<8x1xf32> to vector<8x8xf32>
    %45 = arith.mulf %40, %44 : vector<8x8xf32>
    %cst_29 = arith.constant dense<0.000000e+00> : vector<8x8xf32>
    %46 = tpu.matmul %45, %34, %cst_29 {dimension_numbers = #tpu.dot_dimension_numbers<[1], [0], [0], [1], [0, 0, 1, 1], [], []>} : vector<8x8xf32>, vector<8x8xf32>, vector<8x8xf32> -> vector<8x8xf32>
    %c0_30 = arith.constant 0 : index
    %c8 = arith.constant 8 : index
    %47 = vector.load %arg9[%c0_30, %c8] : memref<8x32xf32, #tpu.memory_space<vmem>>, vector<8x8xf32>
    tpu.vector_store %arg9[%c0_30, %c8], %46 {strides = array<i32>} : memref<8x32xf32, #tpu.memory_space<vmem>>, vector<8x8xf32>,
    %c2 = arith.constant 2 : index
    %c0_31 = arith.constant 0 : index
    %c0_32 = arith.constant 0 : index
    %48 = vector.load %arg3[%c2, %c0_31, %c0_32] : memref<4x32x8xf32, #tpu.memory_space<vmem>>, vector<1x32x8xf32>
    %49 = vector.shape_cast %48 : vector<1x32x8xf32> to vector<32x8xf32>
    %cst_33 = arith.constant dense<0.000000e+00> : vector<8x8xf32>
    %50 = tpu.matmul %7, %49, %cst_33 {dimension_numbers = #tpu.dot_dimension_numbers<[1], [0], [0], [1], [0, 0, 1, 1], [], []>} : vector<8x32xf32>, vector<32x8xf32>, vector<8x8xf32> -> vector<8x8xf32>
    %c2_34 = arith.constant 2 : index
    %c0_35 = arith.constant 0 : index
    %c0_36 = arith.constant 0 : index
    %51 = vector.load %arg7[%c2_34, %c0_35, %c0_36] : memref<4x8x8xf32, #tpu.memory_space<vmem>>, vector<1x8x8xf32>
    %52 = vector.shape_cast %51 : vector<1x8x8xf32> to vector<8x8xf32>
    %c2_37 = arith.constant 2 : index
    %c0_38 = arith.constant 0 : index
    %c0_39 = arith.constant 0 : index
    %53 = vector.load %arg8[%c2_37, %c0_38, %c0_39] : memref<4x8x8xf32, #tpu.memory_space<vmem>>, vector<1x8x8xf32>
    %54 = vector.shape_cast %53 : vector<1x8x8xf32> to vector<8x8xf32>
    %cst_40 = arith.constant dense<0.000000e+00> : vector<8x8xf32>
    %55 = tpu.matmul %50, %52, %cst_40 {dimension_numbers = #tpu.dot_dimension_numbers<[1], [1], [0], [0], [0, 0, 1, 0], [], []>} : vector<8x8xf32>, vector<8x8xf32>, vector<8x8xf32> -> vector<8x8xf32>
    %cst_41 = arith.constant dense<0xFF800000> : vector<8xf32>
    %56 = vector.multi_reduction <maximumf>, %55, %cst_41 [1] : vector<8x8xf32> to vector<8xf32>
    %57 = vector.shape_cast %56 : vector<8xf32> to vector<8x1xf32>
    %58 = vector.broadcast %57 : vector<8x1xf32> to vector<8x8xf32>
    %59 = arith.subf %55, %58 : vector<8x8xf32>
    %60 = math.exp %59 : vector<8x8xf32>
    %cst_42 = arith.constant dense<0.000000e+00> : vector<8xf32>
    %61 = vector.multi_reduction <add>, %60, %cst_42 [1] : vector<8x8xf32> to vector<8xf32>
    %62 = vector.shape_cast %61 : vector<8xf32> to vector<8x1xf32>
    %63 = tpu.reciprocal %62 {approx = true} : vector<8x1xf32> -> vector<8x1xf32>
    %64 = vector.broadcast %63 : vector<8x1xf32> to vector<8x8xf32>
    %65 = arith.mulf %60, %64 : vector<8x8xf32>
    %cst_43 = arith.constant dense<0.000000e+00> : vector<8x8xf32>
    %66 = tpu.matmul %65, %54, %cst_43 {dimension_numbers = #tpu.dot_dimension_numbers<[1], [0], [0], [1], [0, 0, 1, 1], [], []>} : vector<8x8xf32>, vector<8x8xf32>, vector<8x8xf32> -> vector<8x8xf32>
    %c0_44 = arith.constant 0 : index
    %c16 = arith.constant 16 : index
    %67 = vector.load %arg9[%c0_44, %c16] : memref<8x32xf32, #tpu.memory_space<vmem>>, vector<8x8xf32>
    tpu.vector_store %arg9[%c0_44, %c16], %66 {strides = array<i32>} : memref<8x32xf32, #tpu.memory_space<vmem>>, vector<8x8xf32>,
    %c3 = arith.constant 3 : index
    %c0_45 = arith.constant 0 : index
    %c0_46 = arith.constant 0 : index
    %68 = vector.load %arg3[%c3, %c0_45, %c0_46] : memref<4x32x8xf32, #tpu.memory_space<vmem>>, vector<1x32x8xf32>
    %69 = vector.shape_cast %68 : vector<1x32x8xf32> to vector<32x8xf32>
    %cst_47 = arith.constant dense<0.000000e+00> : vector<8x8xf32>
    %70 = tpu.matmul %7, %69, %cst_47 {dimension_numbers = #tpu.dot_dimension_numbers<[1], [0], [0], [1], [0, 0, 1, 1], [], []>} : vector<8x32xf32>, vector<32x8xf32>, vector<8x8xf32> -> vector<8x8xf32>
    %c3_48 = arith.constant 3 : index
    %c0_49 = arith.constant 0 : index
    %c0_50 = arith.constant 0 : index
    %71 = vector.load %arg7[%c3_48, %c0_49, %c0_50] : memref<4x8x8xf32, #tpu.memory_space<vmem>>, vector<1x8x8xf32>
    %72 = vector.shape_cast %71 : vector<1x8x8xf32> to vector<8x8xf32>
    %c3_51 = arith.constant 3 : index
    %c0_52 = arith.constant 0 : index
    %c0_53 = arith.constant 0 : index
    %73 = vector.load %arg8[%c3_51, %c0_52, %c0_53] : memref<4x8x8xf32, #tpu.memory_space<vmem>>, vector<1x8x8xf32>
    %74 = vector.shape_cast %73 : vector<1x8x8xf32> to vector<8x8xf32>
    %cst_54 = arith.constant dense<0.000000e+00> : vector<8x8xf32>
    %75 = tpu.matmul %70, %72, %cst_54 {dimension_numbers = #tpu.dot_dimension_numbers<[1], [1], [0], [0], [0, 0, 1, 0], [], []>} : vector<8x8xf32>, vector<8x8xf32>, vector<8x8xf32> -> vector<8x8xf32>
    %cst_55 = arith.constant dense<0xFF800000> : vector<8xf32>
    %76 = vector.multi_reduction <maximumf>, %75, %cst_55 [1] : vector<8x8xf32> to vector<8xf32>
    %77 = vector.shape_cast %76 : vector<8xf32> to vector<8x1xf32>
    %78 = vector.broadcast %77 : vector<8x1xf32> to vector<8x8xf32>
    %79 = arith.subf %75, %78 : vector<8x8xf32>
    %80 = math.exp %79 : vector<8x8xf32>
    %cst_56 = arith.constant dense<0.000000e+00> : vector<8xf32>
    %81 = vector.multi_reduction <add>, %80, %cst_56 [1] : vector<8x8xf32> to vector<8xf32>
    %82 = vector.shape_cast %81 : vector<8xf32> to vector<8x1xf32>
    %83 = tpu.reciprocal %82 {approx = true} : vector<8x1xf32> -> vector<8x1xf32>
    %84 = vector.broadcast %83 : vector<8x1xf32> to vector<8x8xf32>
    %85 = arith.mulf %80, %84 : vector<8x8xf32>
    %cst_57 = arith.constant dense<0.000000e+00> : vector<8x8xf32>
    %86 = tpu.matmul %85, %74, %cst_57 {dimension_numbers = #tpu.dot_dimension_numbers<[1], [0], [0], [1], [0, 0, 1, 1], [], []>} : vector<8x8xf32>, vector<8x8xf32>, vector<8x8xf32> -> vector<8x8xf32>
    %c0_58 = arith.constant 0 : index
    %c24 = arith.constant 24 : index
    %87 = vector.load %arg9[%c0_58, %c24] : memref<8x32xf32, #tpu.memory_space<vmem>>, vector<8x8xf32>
    tpu.vector_store %arg9[%c0_58, %c24], %86 {strides = array<i32>} : memref<8x32xf32, #tpu.memory_space<vmem>>, vector<8x8xf32>,
    %c0_59 = arith.constant 0 : index
    %c0_60 = arith.constant 0 : index
    %88 = vector.load %arg9[%c0_59, %c0_60] : memref<8x32xf32, #tpu.memory_space<vmem>>, vector<8x32xf32>
    %c0_61 = arith.constant 0 : index
    %c0_62 = arith.constant 0 : index
    %c0_63 = arith.constant 0 : index
    %89 = vector.load %arg6[%c0_61, %c0_62, %c0_63] : memref<1x8x32xf32, #tpu.memory_space<vmem>>, vector<1x8x32xf32>
    %90 = vector.shape_cast %89 : vector<1x8x32xf32> to vector<8x32xf32>
    %91 = vector.shape_cast %88 : vector<8x32xf32> to vector<1x8x32xf32>
    tpu.vector_store %arg6[%c0_61, %c0_62, %c0_63], %91 {strides = array<i32>} : memref<1x8x32xf32, #tpu.memory_space<vmem>>, vector<1x8x32xf32>,
    return
  }
  func.func @transform_0(%arg0: i32, %arg1: i32) -> (i32, i32, i32) {
    %c0_i32 = arith.constant 0 : i32
    %c0_i32_0 = arith.constant 0 : i32
    %c0_i32_1 = arith.constant 0 : i32
    return %arg0, %c0_i32, %c0_i32_0 : i32, i32, i32
  }
  func.func @transform_1(%arg0: i32, %arg1: i32) -> (i32, i32, i32) {
    %c0_i32 = arith.constant 0 : i32
    %c0_i32_0 = arith.constant 0 : i32
    %c0_i32_1 = arith.constant 0 : i32
    %c0_i32_2 = arith.constant 0 : i32
    return %c0_i32, %c0_i32_0, %c0_i32_1 : i32, i32, i32
  }
  func.func @transform_2(%arg0: i32, %arg1: i32) -> (i32, i32, i32) {
    %c0_i32 = arith.constant 0 : i32
    %c0_i32_0 = arith.constant 0 : i32
    %c0_i32_1 = arith.constant 0 : i32
    %c0_i32_2 = arith.constant 0 : i32
    return %c0_i32, %c0_i32_0, %c0_i32_1 : i32, i32, i32
  }
  func.func @transform_3(%arg0: i32, %arg1: i32) -> (i32, i32, i32) {
    %c0_i32 = arith.constant 0 : i32
    %c0_i32_0 = arith.constant 0 : i32
    %c0_i32_1 = arith.constant 0 : i32
    %c0_i32_2 = arith.constant 0 : i32
    return %c0_i32, %c0_i32_0, %c0_i32_1 : i32, i32, i32
  }
  func.func @transform_4(%arg0: i32, %arg1: i32) -> (i32, i32, i32) {
    %c0_i32 = arith.constant 0 : i32
    %c0_i32_0 = arith.constant 0 : i32
    return %arg0, %arg1, %c0_i32 : i32, i32, i32
  }
}

</mosaic_0001>

<llo_original>
// kernel: tpu_custom_call.1
$region0: #{tpu_custom_call.1}
  #allocation0 [shape = 'u32[]', space=smem, size = 0x4, offset = 0x4, fixed_abs, tag = 'smem constant byte address 0x4 - core index']
  #allocation1 [shape = 'u32[72,128]{1,0:T(1,128)}', space=vmem, size = 0x9000, scoped, tag = 'internal scratch']
  #allocation2 [shape = 'f32[4,8,8]{2,1,0:T(8,128)}', space=vmem, size = 0x4000, scoped, tag = 'scratch operand']
  #allocation3 [shape = 'f32[4,8,8]{2,1,0:T(8,128)}', space=vmem, size = 0x4000, scoped, tag = 'scratch operand']
  #allocation4 [shape = 'f32[8,32]{1,0:T(8,128)}', space=vmem, size = 0x1000, scoped, tag = 'scratch operand']
  %s0 = inlined_call_operand.vmem [shape: f32[2,8,32], index: 0, kind: input, shape index: {}]
  %s1 = inlined_call_operand.vmem [shape: f32[4,32,8], index: 1, kind: input, shape index: {}]
  %s2 = inlined_call_operand.vmem [shape: f32[4,32,8], index: 2, kind: input, shape index: {}]
  %s3 = inlined_call_operand.vmem [shape: f32[4,32,8], index: 3, kind: input, shape index: {}]
  %s4 = inlined_call_operand.hbm [shape: f32[2,8,32], index: 4, kind: output, shape index: {}]
  %s5 = sld [smem:[#allocation0]]
  $region53: #{tpu_custom_call.1} parent=0
    _
  %s7 = ssub.s32 1, %s5
  %s8 = scalar_select 0, %s7, %s5
  $region1: #{tpu_custom_call.1} parent=0
    #allocation5 [shape = 'u8[8192]{0}', space=vmem, size = 0x2000, scoped, tag = 'output window, operand 0']
    #allocation6 [shape = 's32[2]{0}', space=sflag, size = 0x8, scoped, tag = 'scoped memory for tpu_custom_call.1']
    %9 = vsyncpa [#allocation6], 0
    %s10 = scalar_lea.sflag [#allocation6], 1
    %11 = vsyncpa %s10, 0
    loop: start=0, step=1, limit=4
    $region2: #{tpu_custom_call.1} parent=1 // loop_pre_header
      _
    $region3: #{tpu_custom_call.1} parent=1 // loop_header
      %s13 = sphi 0, %s17
      %p14 = scmp.ge.s32.totalorder %s13, 4
      %s20 = sphi 0, %s32
      %s21 = sphi 0, %s28
      %s22 = sphi 0, %s20
      %s23 = sphi 0, %s21
      %s24 = sphi 0, %s22
      %s25 = sphi 0, %s23
      %s35 = sphi 0, %s37
      %s38 = sphi 0, %s35
      %s39 = sphi 0, %s38
      %s55 = sphi 0, %s39
      %s59 = sphi 0, %s59
      %s61 = sphi 0, %s59
      %s62 = sphi 0, %s61
      %s76 = sphi 0, %s62
      %s80 = sphi 0, %s80
      %s82 = sphi 0, %s80
      %s83 = sphi 0, %s82
      %s97 = sphi 0, %s83
      %s101 = sphi 0, %s101
      %s103 = sphi 0, %s101
      %s104 = sphi 0, %s103
      %s118 = sphi 0, %s104
      %s126 = sphi 0, %s128
      %s129 = sphi 0, %s126
      %s130 = sphi 0, %s129
      %s146 = sphi 0, %s130
    $region4: #{tpu_custom_call.1} parent=1 // loop_header_branch
      %16 = sbr.rel (%p14) target = $region8
    $region5: #{tpu_custom_call.1} parent=1 // loop_body
      %s18 = ssub.s32 %s13, 1
      %s19 = ssub.s32 %s13, 2
      %s26 = sadd.s32 1, %s21
      %p27 = scmp.ge.s32.totalorder %s26, 1
      %s28 = scalar_select %p27, 0, %s26
      %s29 = sadd.s32 1, %s20
      %s30 = scalar_select %p27, %s29, %s20
      %p31 = scmp.ge.s32.totalorder %s30, 2
      %s32 = scalar_select %p31, 0, %s30
      %s33 = ssub.s32 %s20, %s32
      %p34 = scmp.eq.s32.totalorder %s33, 0
      %s36 = sadd.s32 %s35, 1
      %s37 = scalar_select %p34, %s35, %s36
      %p40 = pneg %p34
      %p41 = scmp.eq.s32.totalorder %s13, 1
      %p42 = por %p40, %p41
      %p43 = scmp.ne.s32.totalorder %s35, %s38
      %p44 = scmp.eq.s32.totalorder %s13, 0
      %p45 = por %p43, %p44
      %p46 = scmp.ne.s32.totalorder %s35, %s38
      %p47 = scmp.eq.s32.totalorder %s18, 1
      %p48 = por %p46, %p47
      %p49 = scmp.ne.s32.totalorder %s38, %s39
      %p50 = scmp.eq.s32.totalorder %s18, 0
      %p51 = por %p49, %p50
      %p52 = scmp.ne.s32.totalorder %s38, %s39
      %p53 = scmp.eq.s32.totalorder %s19, 1
      %p54 = por %p52, %p53
      %p56 = scmp.ne.s32.totalorder %s39, %s55
      %p57 = scmp.eq.s32.totalorder %s19, 0
      %p58 = por %p56, %p57
      %s60 = sadd.s32 %s59, 1
      %p63 = scmp.eq.s32.totalorder %s13, 1
      %p64 = scmp.ne.s32.totalorder %s59, %s61
      %p65 = scmp.eq.s32.totalorder %s13, 0
      %p66 = por %p64, %p65
      %p67 = scmp.ne.s32.totalorder %s59, %s61
      %p68 = scmp.eq.s32.totalorder %s18, 1
      %p69 = por %p67, %p68
      %p70 = scmp.ne.s32.totalorder %s61, %s62
      %p71 = scmp.eq.s32.totalorder %s18, 0
      %p72 = por %p70, %p71
      %p73 = scmp.ne.s32.totalorder %s61, %s62
      %p74 = scmp.eq.s32.totalorder %s19, 1
      %p75 = por %p73, %p74
      %p77 = scmp.ne.s32.totalorder %s62, %s76
      %p78 = scmp.eq.s32.totalorder %s19, 0
      %p79 = por %p77, %p78
      %s81 = sadd.s32 %s80, 1
      %p84 = scmp.eq.s32.totalorder %s13, 1
      %p85 = scmp.ne.s32.totalorder %s80, %s82
      %p86 = scmp.eq.s32.totalorder %s13, 0
      %p87 = por %p85, %p86
      %p88 = scmp.ne.s32.totalorder %s80, %s82
      %p89 = scmp.eq.s32.totalorder %s18, 1
      %p90 = por %p88, %p89
      %p91 = scmp.ne.s32.totalorder %s82, %s83
      %p92 = scmp.eq.s32.totalorder %s18, 0
      %p93 = por %p91, %p92
      %p94 = scmp.ne.s32.totalorder %s82, %s83
      %p95 = scmp.eq.s32.totalorder %s19, 1
      %p96 = por %p94, %p95
      %p98 = scmp.ne.s32.totalorder %s83, %s97
      %p99 = scmp.eq.s32.totalorder %s19, 0
      %p100 = por %p98, %p99
      %s102 = sadd.s32 %s101, 1
      %p105 = scmp.eq.s32.totalorder %s13, 1
      %p106 = scmp.ne.s32.totalorder %s101, %s103
      %p107 = scmp.eq.s32.totalorder %s13, 0
      %p108 = por %p106, %p107
      %p109 = scmp.ne.s32.totalorder %s101, %s103
      %p110 = scmp.eq.s32.totalorder %s18, 1
      %p111 = por %p109, %p110
      %p112 = scmp.ne.s32.totalorder %s103, %s104
      %p113 = scmp.eq.s32.totalorder %s18, 0
      %p114 = por %p112, %p113
      %p115 = scmp.ne.s32.totalorder %s103, %s104
      %p116 = scmp.eq.s32.totalorder %s19, 1
      %p117 = por %p115, %p116
      %p119 = scmp.ne.s32.totalorder %s104, %s118
      %p120 = scmp.eq.s32.totalorder %s19, 0
      %p121 = por %p119, %p120
      %s122 = ssub.s32 %s20, %s32
      %s123 = ssub.s32 %s21, %s28
      %s124 = sor.u32 %s122, %s123
      %p125 = scmp.eq.s32.totalorder %s124, 0
      %s127 = sadd.s32 %s126, 1
      %s128 = scalar_select %p125, %s126, %s127
      %p131 = pneg %p125
      %p132 = scmp.eq.s32.totalorder %s13, 1
      %p133 = por %p131, %p132
      %p134 = scmp.ne.s32.totalorder %s126, %s129
      %p135 = scmp.eq.s32.totalorder %s13, 0
      %p136 = por %p134, %p135
      %p137 = scmp.ne.s32.totalorder %s126, %s129
      %p138 = scmp.eq.s32.totalorder %s18, 1
      %p139 = por %p137, %p138
      %p140 = scmp.ne.s32.totalorder %s129, %s130
      %p141 = scmp.eq.s32.totalorder %s18, 0
      %p142 = por %p140, %p141
      %p143 = scmp.ne.s32.totalorder %s129, %s130
      %p144 = scmp.eq.s32.totalorder %s19, 1
      %p145 = por %p143, %p144
      %p147 = scmp.ne.s32.totalorder %s130, %s146
      %p148 = scmp.eq.s32.totalorder %s19, 0
      %p149 = por %p147, %p148
      %p150 = scmp.le.s32.totalorder 1, %s13
      %p151 = scmp.lt.s32.totalorder %s13, 3
      %p152 = pnand %p150, %p151
      %p153 = pneg %p152
      // Predicated region
      $region9: #{tpu_custom_call.1} parent=5 // pred_check
        _
      $region10: #{tpu_custom_call.1} parent=5 // pred_check_branch
        %155 = sbr.rel (%p152) target = $region12
      $region11: #{tpu_custom_call.1} parent=5 // pred_region
        %s156 = ssub.s32 %s13, 1
        // Predicated region
        $region13: #{tpu_custom_call.1} parent=11 // pred_check
          %p157 = pneg %p72
        $region14: #{tpu_custom_call.1} parent=11 // pred_check_branch
          %159 = sbr.rel (%p157) target = $region16
        $region15: #{tpu_custom_call.1} parent=11 // pred_region
          _
        $region16: #{tpu_custom_call.1} parent=11 // pred_fallthru
          _
        // Predicated region
        $region17: #{tpu_custom_call.1} parent=11 // pred_check
          %p160 = pneg %p93
        $region18: #{tpu_custom_call.1} parent=11 // pred_check_branch
          %162 = sbr.rel (%p160) target = $region20
        $region19: #{tpu_custom_call.1} parent=11 // pred_region
          _
        $region20: #{tpu_custom_call.1} parent=11 // pred_fallthru
          _
        // Predicated region
        $region21: #{tpu_custom_call.1} parent=11 // pred_check
          %p163 = pneg %p114
        $region22: #{tpu_custom_call.1} parent=11 // pred_check_branch
          %165 = sbr.rel (%p163) target = $region24
        $region23: #{tpu_custom_call.1} parent=11 // pred_region
          _
        $region24: #{tpu_custom_call.1} parent=11 // pred_fallthru
          _
      $region12: #{tpu_custom_call.1} parent=5 // pred_fallthru
        _
      %p166 = scmp.lt.s32.totalorder %s13, 2
      // Predicated region
      $region25: #{tpu_custom_call.1} parent=5 // pred_check
        %p167 = pneg %p166
      $region26: #{tpu_custom_call.1} parent=5 // pred_check_branch
        %169 = sbr.rel (%p167) target = $region28
      $region27: #{tpu_custom_call.1} parent=5 // pred_region
        // Predicated region
        $region29: #{tpu_custom_call.1} parent=27 // pred_check
          %p170 = pneg %p45
        $region30: #{tpu_custom_call.1} parent=27 // pred_check_branch
          %172 = sbr.rel (%p170) target = $region32
        $region31: #{tpu_custom_call.1} parent=27 // pred_region
          %p173 = scmp.lt.s32.totalorder %s20, 1
          %s174 = scalar_select %p173, %s20, 1
          %s175 = smul.addr %s174, 8
          %s176 = scalar_lea.vmem %s0, %s175
        $region32: #{tpu_custom_call.1} parent=27 // pred_fallthru
          _
      $region28: #{tpu_custom_call.1} parent=5 // pred_fallthru
        _
      %p177 = scmp.le.s32.totalorder 1, %s13
      %p178 = scmp.lt.s32.totalorder %s13, 3
      %p179 = pnand %p177, %p178
      %p180 = pneg %p179
      // Predicated region
      $region33: #{tpu_custom_call.1} parent=5 // pred_check
        _
      $region34: #{tpu_custom_call.1} parent=5 // pred_check_branch
        %182 = sbr.rel (%p179) target = $region36
      $region35: #{tpu_custom_call.1} parent=5 // pred_region
        %s183 = ssub.s32 %s13, 1
        %p184 = scmp.lt.s32.totalorder %s22, 1
        %s185 = scalar_select %p184, %s22, 1
        %s186 = smul.addr %s185, 8
        %s187 = scalar_lea.vmem %s0, %s186
        %p188 = pneg %p51
        %p189 = pneg %p48
        %p190 = pneg %p72
        %p191 = pneg %p69
        %p192 = pneg %p93
        %p193 = pneg %p90
        %p194 = pneg %p114
        %p195 = pneg %p111
        %p196 = pneg %p142
        %p197 = pneg %p139
        %s198 = sand.u32 %s129, 1
        %s199 = scalar_lea.sflag [#allocation6], %s198
        %s200 = sand.u32 %s129, 1
        %s201 = smul.addr %s200, 8
        %s202 = scalar_lea.vmem [#allocation5], %s201
        %p203 = scmp.lt.s32.totalorder %s22, 1
        %s204 = scalar_select %p203, %s22, 1
        %s205 = smul.addr %s204, 8
        %s206 = scalar_lea.vmem %s0, %s205
        %p207 = scmp.eq.s32.totalorder %s23, 0
        // Predicated region
        $region37: #{tpu_custom_call.1} parent=35 // pred_check
          %p208 = pneg %p207
        $region38: #{tpu_custom_call.1} parent=35 // pred_check_branch
          %210 = sbr.rel (%p208) target = $region40
        $region39: #{tpu_custom_call.1} parent=35 // pred_region
          %v211 = vld [vmem:[%s206] sm:$0xff]
          %v212 = vld [vmem:[%s2] sm:$0xff]
          %v213 = vld [vmem:[%s2 + $0x8] sm:$0xff]
          %v214 = vld [vmem:[%s2 + $0x10] sm:$0xff]
          %v215 = vld [vmem:[%s2 + $0x18] sm:$0xff]
          %vm216 = vcmask 261120
          %v218 = vsel %vm216, %v211, 0
          %220 = vmatpush.msra.mxu0 0.0
          %221 = vmatpush.msra.mxu0 0.0
          %222 = vmatpush.msra.mxu0 0.0
          %223 = vmatpush.msra.mxu0 0.0
          %224 = vmatpush.msra.mxu0 0.0
          %225 = vmatpush.msra.mxu0 0.0
          %226 = vmatpush.msra.mxu0 0.0
          %227 = vmatpush.msra.mxu0 0.0
          %228 = vmatpush.msra.mxu0 0.0
          %229 = vmatpush.msra.mxu0 0.0
          %230 = vmatpush.msra.mxu0 0.0
          %231 = vmatpush.msra.mxu0 0.0
          %232 = vmatpush.msra.mxu0 %v215
          %233 = vmatpush.msra.mxu0 %v214
          %234 = vmatpush.msra.mxu0 %v213
          %235 = vmatpush.msra.mxu0 %v212
          %236 = vmatmul.f32.gmra.mxu0 %v218
          %v237 = vpop.f32.mrf.mxu0
          %v238 = vadd.f32 0.0, %v237
          %239 = vdwg.mxu0
          %vm240 = vcmask 64512
          %241 = vst.msk [vmem:[#allocation2] sm:$0xff] %vm240, %v238
          %v242 = vld [vmem:[%s3] sm:$0xff]
          %v243 = vld [vmem:[%s3 + $0x8] sm:$0xff]
          %v244 = vld [vmem:[%s3 + $0x10] sm:$0xff]
          %v245 = vld [vmem:[%s3 + $0x18] sm:$0xff]
          %246 = vmatpush.msra.mxu0 0.0
          %247 = vmatpush.msra.mxu0 0.0
          %248 = vmatpush.msra.mxu0 0.0
          %249 = vmatpush.msra.mxu0 0.0
          %250 = vmatpush.msra.mxu0 0.0
          %251 = vmatpush.msra.mxu0 0.0
          %252 = vmatpush.msra.mxu0 0.0
          %253 = vmatpush.msra.mxu0 0.0
          %254 = vmatpush.msra.mxu0 0.0
          %255 = vmatpush.msra.mxu0 0.0
          %256 = vmatpush.msra.mxu0 0.0
          %257 = vmatpush.msra.mxu0 0.0
          %258 = vmatpush.msra.mxu0 %v245
          %259 = vmatpush.msra.mxu0 %v244
          %260 = vmatpush.msra.mxu0 %v243
          %261 = vmatpush.msra.mxu0 %v242
          %262 = vmatmul.f32.gmra.mxu0 %v218
          %v263 = vpop.f32.mrf.mxu0
          %v264 = vadd.f32 0.0, %v263
          %265 = vdwg.mxu0
          %266 = vst.msk [vmem:[#allocation3] sm:$0xff] %vm240, %v264
          %s267 = scalar_lea.vmem %s2, 32
          %v268 = vld [vmem:[%s267] sm:$0xff]
          %v269 = vld [vmem:[%s267 + $0x8] sm:$0xff]
          %v270 = vld [vmem:[%s267 + $0x10] sm:$0xff]
          %v271 = vld [vmem:[%s267 + $0x18] sm:$0xff]
          %272 = vmatpush.msra.mxu0 0.0
          %273 = vmatpush.msra.mxu0 0.0
          %274 = vmatpush.msra.mxu0 0.0
          %275 = vmatpush.msra.mxu0 0.0
          %276 = vmatpush.msra.mxu0 0.0
          %277 = vmatpush.msra.mxu0 0.0
          %278 = vmatpush.msra.mxu0 0.0
          %279 = vmatpush.msra.mxu0 0.0
          %280 = vmatpush.msra.mxu0 0.0
          %281 = vmatpush.msra.mxu0 0.0
          %282 = vmatpush.msra.mxu0 0.0
          %283 = vmatpush.msra.mxu0 0.0
          %284 = vmatpush.msra.mxu0 %v271
          %285 = vmatpush.msra.mxu0 %v270
          %286 = vmatpush.msra.mxu0 %v269
          %287 = vmatpush.msra.mxu0 %v268
          %288 = vmatmul.f32.gmra.mxu0 %v218
          %v289 = vpop.f32.mrf.mxu0
          %v290 = vadd.f32 0.0, %v289
          %291 = vdwg.mxu0
          %s292 = scalar_lea.vmem [#allocation2], 8
          %293 = vst.msk [vmem:[%s292] sm:$0xff] %vm240, %v290
          %s294 = scalar_lea.vmem %s3, 32
          %v295 = vld [vmem:[%s294] sm:$0xff]
          %v296 = vld [vmem:[%s294 + $0x8] sm:$0xff]
          %v297 = vld [vmem:[%s294 + $0x10] sm:$0xff]
          %v298 = vld [vmem:[%s294 + $0x18] sm:$0xff]
          %299 = vmatpush.msra.mxu0 0.0
          %300 = vmatpush.msra.mxu0 0.0
          %301 = vmatpush.msra.mxu0 0.0
          %302 = vmatpush.msra.mxu0 0.0
          %303 = vmatpush.msra.mxu0 0.0
          %304 = vmatpush.msra.mxu0 0.0
          %305 = vmatpush.msra.mxu0 0.0
          %306 = vmatpush.msra.mxu0 0.0
          %307 = vmatpush.msra.mxu0 0.0
          %308 = vmatpush.msra.mxu0 0.0
          %309 = vmatpush.msra.mxu0 0.0
          %310 = vmatpush.msra.mxu0 0.0
          %311 = vmatpush.msra.mxu0 %v298
          %312 = vmatpush.msra.mxu0 %v297
          %313 = vmatpush.msra.mxu0 %v296
          %314 = vmatpush.msra.mxu0 %v295
          %315 = vmatmul.f32.gmra.mxu0 %v218
          %v316 = vpop.f32.mrf.mxu0
          %v317 = vadd.f32 0.0, %v316
          %318 = vdwg.mxu0
          %s319 = scalar_lea.vmem [#allocation3], 8
          %320 = vst.msk [vmem:[%s319] sm:$0xff] %vm240, %v317
          %s321 = scalar_lea.vmem %s2, 64
          %v322 = vld [vmem:[%s321] sm:$0xff]
          %v323 = vld [vmem:[%s321 + $0x8] sm:$0xff]
          %v324 = vld [vmem:[%s321 + $0x10] sm:$0xff]
          %v325 = vld [vmem:[%s321 + $0x18] sm:$0xff]
          %326 = vmatpush.msra.mxu0 0.0
          %327 = vmatpush.msra.mxu0 0.0
          %328 = vmatpush.msra.mxu0 0.0
          %329 = vmatpush.msra.mxu0 0.0
          %330 = vmatpush.msra.mxu0 0.0
          %331 = vmatpush.msra.mxu0 0.0
          %332 = vmatpush.msra.mxu0 0.0
          %333 = vmatpush.msra.mxu0 0.0
          %334 = vmatpush.msra.mxu0 0.0
          %335 = vmatpush.msra.mxu0 0.0
          %336 = vmatpush.msra.mxu0 0.0
          %337 = vmatpush.msra.mxu0 0.0
          %338 = vmatpush.msra.mxu0 %v325
          %339 = vmatpush.msra.mxu0 %v324
          %340 = vmatpush.msra.mxu0 %v323
          %341 = vmatpush.msra.mxu0 %v322
          %342 = vmatmul.f32.gmra.mxu0 %v218
          %v343 = vpop.f32.mrf.mxu0
          %v344 = vadd.f32 0.0, %v343
          %345 = vdwg.mxu0
          %s346 = scalar_lea.vmem [#allocation2], 16
          %347 = vst.msk [vmem:[%s346] sm:$0xff] %vm240, %v344
          %s348 = scalar_lea.vmem %s3, 64
          %v349 = vld [vmem:[%s348] sm:$0xff]
          %v350 = vld [vmem:[%s348 + $0x8] sm:$0xff]
          %v351 = vld [vmem:[%s348 + $0x10] sm:$0xff]
          %v352 = vld [vmem:[%s348 + $0x18] sm:$0xff]
          %353 = vmatpush.msra.mxu0 0.0
          %354 = vmatpush.msra.mxu0 0.0
          %355 = vmatpush.msra.mxu0 0.0
          %356 = vmatpush.msra.mxu0 0.0
          %357 = vmatpush.msra.mxu0 0.0
          %358 = vmatpush.msra.mxu0 0.0
          %359 = vmatpush.msra.mxu0 0.0
          %360 = vmatpush.msra.mxu0 0.0
          %361 = vmatpush.msra.mxu0 0.0
          %362 = vmatpush.msra.mxu0 0.0
          %363 = vmatpush.msra.mxu0 0.0
          %364 = vmatpush.msra.mxu0 0.0
          %365 = vmatpush.msra.mxu0 %v352
          %366 = vmatpush.msra.mxu0 %v351
          %367 = vmatpush.msra.mxu0 %v350
          %368 = vmatpush.msra.mxu0 %v349
          %369 = vmatmul.f32.gmra.mxu0 %v218
          %v370 = vpop.f32.mrf.mxu0
          %v371 = vadd.f32 0.0, %v370
          %372 = vdwg.mxu0
          %s373 = scalar_lea.vmem [#allocation3], 16
          %374 = vst.msk [vmem:[%s373] sm:$0xff] %vm240, %v371
          %s375 = scalar_lea.vmem %s2, 96
          %v376 = vld [vmem:[%s375] sm:$0xff]
          %v377 = vld [vmem:[%s375 + $0x8] sm:$0xff]
          %v378 = vld [vmem:[%s375 + $0x10] sm:$0xff]
          %v379 = vld [vmem:[%s375 + $0x18] sm:$0xff]
          %380 = vmatpush.msra.mxu0 0.0
          %381 = vmatpush.msra.mxu0 0.0
          %382 = vmatpush.msra.mxu0 0.0
          %383 = vmatpush.msra.mxu0 0.0
          %384 = vmatpush.msra.mxu0 0.0
          %385 = vmatpush.msra.mxu0 0.0
          %386 = vmatpush.msra.mxu0 0.0
          %387 = vmatpush.msra.mxu0 0.0
          %388 = vmatpush.msra.mxu0 0.0
          %389 = vmatpush.msra.mxu0 0.0
          %390 = vmatpush.msra.mxu0 0.0
          %391 = vmatpush.msra.mxu0 0.0
          %392 = vmatpush.msra.mxu0 %v379
          %393 = vmatpush.msra.mxu0 %v378
          %394 = vmatpush.msra.mxu0 %v377
          %395 = vmatpush.msra.mxu0 %v376
          %396 = vmatmul.f32.gmra.mxu0 %v218
          %v397 = vpop.f32.mrf.mxu0
          %v398 = vadd.f32 0.0, %v397
          %399 = vdwg.mxu0
          %s400 = scalar_lea.vmem [#allocation2], 24
          %401 = vst.msk [vmem:[%s400] sm:$0xff] %vm240, %v398
          %s402 = scalar_lea.vmem %s3, 96
          %v403 = vld [vmem:[%s402] sm:$0xff]
          %v404 = vld [vmem:[%s402 + $0x8] sm:$0xff]
          %v405 = vld [vmem:[%s402 + $0x10] sm:$0xff]
          %v406 = vld [vmem:[%s402 + $0x18] sm:$0xff]
          %407 = vmatpush.msra.mxu0 0.0
          %408 = vmatpush.msra.mxu0 0.0
          %409 = vmatpush.msra.mxu0 0.0
          %410 = vmatpush.msra.mxu0 0.0
          %411 = vmatpush.msra.mxu0 0.0
          %412 = vmatpush.msra.mxu0 0.0
          %413 = vmatpush.msra.mxu0 0.0
          %414 = vmatpush.msra.mxu0 0.0
          %415 = vmatpush.msra.mxu0 0.0
          %416 = vmatpush.msra.mxu0 0.0
          %417 = vmatpush.msra.mxu0 0.0
          %418 = vmatpush.msra.mxu0 0.0
          %419 = vmatpush.msra.mxu0 %v406
          %420 = vmatpush.msra.mxu0 %v405
          %421 = vmatpush.msra.mxu0 %v404
          %422 = vmatpush.msra.mxu0 %v403
          %423 = vmatmul.f32.gmra.mxu0 %v218
          %v424 = vpop.f32.mrf.mxu0
          %v425 = vadd.f32 0.0, %v424
          %426 = vdwg.mxu0
          %s427 = scalar_lea.vmem [#allocation3], 24
          %428 = vst.msk [vmem:[%s427] sm:$0xff] %vm240, %v425
        $region40: #{tpu_custom_call.1} parent=35 // pred_fallthru
          _
        %s429 = smul.u32 %s23, 8
        %s430 = scalar_lea.vmem %s206, %s429
        %v431 = vld [vmem:[%s430] sm:$0xff]
        %v432 = vld [vmem:[%s1] sm:$0xff]
        %v433 = vld [vmem:[%s1 + $0x8] sm:$0xff]
        %v434 = vld [vmem:[%s1 + $0x10] sm:$0xff]
        %v435 = vld [vmem:[%s1 + $0x18] sm:$0xff]
        %vm436 = vcmask 261120
        %v438 = vsel %vm436, %v431, 0
        %440 = vmatpush.msra.mxu0 0.0
        %441 = vmatpush.msra.mxu0 0.0
        %442 = vmatpush.msra.mxu0 0.0
        %443 = vmatpush.msra.mxu0 0.0
        %444 = vmatpush.msra.mxu0 0.0
        %445 = vmatpush.msra.mxu0 0.0
        %446 = vmatpush.msra.mxu0 0.0
        %447 = vmatpush.msra.mxu0 0.0
        %448 = vmatpush.msra.mxu0 0.0
        %449 = vmatpush.msra.mxu0 0.0
        %450 = vmatpush.msra.mxu0 0.0
        %451 = vmatpush.msra.mxu0 0.0
        %452 = vmatpush.msra.mxu0 %v435
        %453 = vmatpush.msra.mxu0 %v434
        %454 = vmatpush.msra.mxu0 %v433
        %455 = vmatpush.msra.mxu0 %v432
        %456 = vmatmul.f32.gmra.mxu0 %v438
        %v457 = vpop.f32.mrf.mxu0
        %v458 = vadd.f32 0.0, %v457
        %459 = vdwg.mxu0
        %v460 = vld [vmem:[#allocation2] sm:$0xff]
        %v461 = vld [vmem:[#allocation3] sm:$0xff]
        %vm462 = vcmask 64512
        %v464 = vsel %vm462, %v458, 0
        %v467 = vsel %vm462, %v460, 0
        %469 = vmatpush.xpose.msra.mxu0 0.0
        %470 = vmatpush.xpose.msra.mxu0 0.0
        %471 = vmatpush.xpose.msra.mxu0 0.0
        %472 = vmatpush.xpose.msra.mxu0 0.0
        %473 = vmatpush.xpose.msra.mxu0 0.0
        %474 = vmatpush.xpose.msra.mxu0 0.0
        %475 = vmatpush.xpose.msra.mxu0 0.0
        %476 = vmatpush.xpose.msra.mxu0 0.0
        %477 = vmatpush.xpose.msra.mxu0 0.0
        %478 = vmatpush.xpose.msra.mxu0 0.0
        %479 = vmatpush.xpose.msra.mxu0 0.0
        %480 = vmatpush.xpose.msra.mxu0 0.0
        %481 = vmatpush.xpose.msra.mxu0 0.0
        %482 = vmatpush.xpose.msra.mxu0 0.0
        %483 = vmatpush.xpose.msra.mxu0 0.0
        %484 = vmatpush.xpose.msra.mxu0 %v467
        %485 = vmatmul.f32.gmra.mxu0 %v464
        %v486 = vpop.f32.mrf.mxu0
        %v487 = vadd.f32 0.0, %v486
        %488 = vdwg.mxu0
        %v489 = vsel %vm462, %v487, -inf
        %490 = vmax.xlane.f32.xlu0 %v489
        %v491 = vpop.xlane.xlu0 %490
        %v492 = vsub.f32 %v487, %v491
        %v493 = vmul.f32 %v492, 1.442695
        %v494 = vpow.pop %v493
        %v495 = vsel %vm462, %v494, 0.0
        %496 = vadd.xlane.f32.xlu0 %v495
        %v497 = vpop.xlane.xlu0 %496
        %v498 = vrcp.pop %v497
        %v499 = vmul.f32 %v494, %v498
        %v501 = vsel %vm462, %v499, 0
        %503 = vmatpush.msra.mxu0 0.0
        %504 = vmatpush.msra.mxu0 0.0
        %505 = vmatpush.msra.mxu0 0.0
        %506 = vmatpush.msra.mxu0 0.0
        %507 = vmatpush.msra.mxu0 0.0
        %508 = vmatpush.msra.mxu0 0.0
        %509 = vmatpush.msra.mxu0 0.0
        %510 = vmatpush.msra.mxu0 0.0
        %511 = vmatpush.msra.mxu0 0.0
        %512 = vmatpush.msra.mxu0 0.0
        %513 = vmatpush.msra.mxu0 0.0
        %514 = vmatpush.msra.mxu0 0.0
        %515 = vmatpush.msra.mxu0 0.0
        %516 = vmatpush.msra.mxu0 0.0
        %517 = vmatpush.msra.mxu0 0.0
        %518 = vmatpush.msra.mxu0 %v461
        %519 = vmatmul.f32.gmra.mxu0 %v501
        %v520 = vpop.f32.mrf.mxu0
        %v521 = vadd.f32 0.0, %v520
        %522 = vdwg.mxu0
        %523 = vst.msk [vmem:[#allocation4] sm:$0xff] %vm462, %v521
        %s524 = scalar_lea.vmem %s1, 32
        %v525 = vld [vmem:[%s524] sm:$0xff]
        %v526 = vld [vmem:[%s524 + $0x8] sm:$0xff]
        %v527 = vld [vmem:[%s524 + $0x10] sm:$0xff]
        %v528 = vld [vmem:[%s524 + $0x18] sm:$0xff]
        %529 = vmatpush.msra.mxu0 0.0
        %530 = vmatpush.msra.mxu0 0.0
        %531 = vmatpush.msra.mxu0 0.0
        %532 = vmatpush.msra.mxu0 0.0
        %533 = vmatpush.msra.mxu0 0.0
        %534 = vmatpush.msra.mxu0 0.0
        %535 = vmatpush.msra.mxu0 0.0
        %536 = vmatpush.msra.mxu0 0.0
        %537 = vmatpush.msra.mxu0 0.0
        %538 = vmatpush.msra.mxu0 0.0
        %539 = vmatpush.msra.mxu0 0.0
        %540 = vmatpush.msra.mxu0 0.0
        %541 = vmatpush.msra.mxu0 %v528
        %542 = vmatpush.msra.mxu0 %v527
        %543 = vmatpush.msra.mxu0 %v526
        %544 = vmatpush.msra.mxu0 %v525
        %545 = vmatmul.f32.gmra.mxu0 %v438
        %v546 = vpop.f32.mrf.mxu0
        %v547 = vadd.f32 0.0, %v546
        %548 = vdwg.mxu0
        %s549 = scalar_lea.vmem [#allocation2], 8
        %v550 = vld [vmem:[%s549] sm:$0xff]
        %s551 = scalar_lea.vmem [#allocation3], 8
        %v552 = vld [vmem:[%s551] sm:$0xff]
        %v554 = vsel %vm462, %v547, 0
        %v557 = vsel %vm462, %v550, 0
        %559 = vmatpush.xpose.msra.mxu0 0.0
        %560 = vmatpush.xpose.msra.mxu0 0.0
        %561 = vmatpush.xpose.msra.mxu0 0.0
        %562 = vmatpush.xpose.msra.mxu0 0.0
        %563 = vmatpush.xpose.msra.mxu0 0.0
        %564 = vmatpush.xpose.msra.mxu0 0.0
        %565 = vmatpush.xpose.msra.mxu0 0.0
        %566 = vmatpush.xpose.msra.mxu0 0.0
        %567 = vmatpush.xpose.msra.mxu0 0.0
        %568 = vmatpush.xpose.msra.mxu0 0.0
        %569 = vmatpush.xpose.msra.mxu0 0.0
        %570 = vmatpush.xpose.msra.mxu0 0.0
        %571 = vmatpush.xpose.msra.mxu0 0.0
        %572 = vmatpush.xpose.msra.mxu0 0.0
        %573 = vmatpush.xpose.msra.mxu0 0.0
        %574 = vmatpush.xpose.msra.mxu0 %v557
        %575 = vmatmul.f32.gmra.mxu0 %v554
        %v576 = vpop.f32.mrf.mxu0
        %v577 = vadd.f32 0.0, %v576
        %578 = vdwg.mxu0
        %v579 = vsel %vm462, %v577, -inf
        %580 = vmax.xlane.f32.xlu0 %v579
        %v581 = vpop.xlane.xlu0 %580
        %v582 = vsub.f32 %v577, %v581
        %v583 = vmul.f32 %v582, 1.442695
        %v584 = vpow.pop %v583
        %v585 = vsel %vm462, %v584, 0.0
        %586 = vadd.xlane.f32.xlu0 %v585
        %v587 = vpop.xlane.xlu0 %586
        %v588 = vrcp.pop %v587
        %v589 = vmul.f32 %v584, %v588
        %v591 = vsel %vm462, %v589, 0
        %593 = vmatpush.msra.mxu0 0.0
        %594 = vmatpush.msra.mxu0 0.0
        %595 = vmatpush.msra.mxu0 0.0
        %596 = vmatpush.msra.mxu0 0.0
        %597 = vmatpush.msra.mxu0 0.0
        %598 = vmatpush.msra.mxu0 0.0
        %599 = vmatpush.msra.mxu0 0.0
        %600 = vmatpush.msra.mxu0 0.0
        %601 = vmatpush.msra.mxu0 0.0
        %602 = vmatpush.msra.mxu0 0.0
        %603 = vmatpush.msra.mxu0 0.0
        %604 = vmatpush.msra.mxu0 0.0
        %605 = vmatpush.msra.mxu0 0.0
        %606 = vmatpush.msra.mxu0 0.0
        %607 = vmatpush.msra.mxu0 0.0
        %608 = vmatpush.msra.mxu0 %v552
        %609 = vmatmul.f32.gmra.mxu0 %v591
        %v610 = vpop.f32.mrf.mxu0
        %v611 = vadd.f32 0.0, %v610
        %612 = vdwg.mxu0
        %614 = vrot.lane.b32.xlu0 %v611, 8
        %v615 = vpop.permute.xlu0 %614
        %vm617 = vcmask 130112
        %618 = vst.msk [vmem:[#allocation4] sm:$0xff] %vm617, %v615
        %s619 = scalar_lea.vmem %s1, 64
        %v620 = vld [vmem:[%s619] sm:$0xff]
        %v621 = vld [vmem:[%s619 + $0x8] sm:$0xff]
        %v622 = vld [vmem:[%s619 + $0x10] sm:$0xff]
        %v623 = vld [vmem:[%s619 + $0x18] sm:$0xff]
        %624 = vmatpush.msra.mxu0 0.0
        %625 = vmatpush.msra.mxu0 0.0
        %626 = vmatpush.msra.mxu0 0.0
        %627 = vmatpush.msra.mxu0 0.0
        %628 = vmatpush.msra.mxu0 0.0
        %629 = vmatpush.msra.mxu0 0.0
        %630 = vmatpush.msra.mxu0 0.0
        %631 = vmatpush.msra.mxu0 0.0
        %632 = vmatpush.msra.mxu0 0.0
        %633 = vmatpush.msra.mxu0 0.0
        %634 = vmatpush.msra.mxu0 0.0
        %635 = vmatpush.msra.mxu0 0.0
        %636 = vmatpush.msra.mxu0 %v623
        %637 = vmatpush.msra.mxu0 %v622
        %638 = vmatpush.msra.mxu0 %v621
        %639 = vmatpush.msra.mxu0 %v620
        %640 = vmatmul.f32.gmra.mxu0 %v438
        %v641 = vpop.f32.mrf.mxu0
        %v642 = vadd.f32 0.0, %v641
        %643 = vdwg.mxu0
        %s644 = scalar_lea.vmem [#allocation2], 16
        %v645 = vld [vmem:[%s644] sm:$0xff]
        %s646 = scalar_lea.vmem [#allocation3], 16
        %v647 = vld [vmem:[%s646] sm:$0xff]
        %v649 = vsel %vm462, %v642, 0
        %v652 = vsel %vm462, %v645, 0
        %654 = vmatpush.xpose.msra.mxu0 0.0
        %655 = vmatpush.xpose.msra.mxu0 0.0
        %656 = vmatpush.xpose.msra.mxu0 0.0
        %657 = vmatpush.xpose.msra.mxu0 0.0
        %658 = vmatpush.xpose.msra.mxu0 0.0
        %659 = vmatpush.xpose.msra.mxu0 0.0
        %660 = vmatpush.xpose.msra.mxu0 0.0
        %661 = vmatpush.xpose.msra.mxu0 0.0
        %662 = vmatpush.xpose.msra.mxu0 0.0
        %663 = vmatpush.xpose.msra.mxu0 0.0
        %664 = vmatpush.xpose.msra.mxu0 0.0
        %665 = vmatpush.xpose.msra.mxu0 0.0
        %666 = vmatpush.xpose.msra.mxu0 0.0
        %667 = vmatpush.xpose.msra.mxu0 0.0
        %668 = vmatpush.xpose.msra.mxu0 0.0
        %669 = vmatpush.xpose.msra.mxu0 %v652
        %670 = vmatmul.f32.gmra.mxu0 %v649
        %v671 = vpop.f32.mrf.mxu0
        %v672 = vadd.f32 0.0, %v671
        %673 = vdwg.mxu0
        %v674 = vsel %vm462, %v672, -inf
        %675 = vmax.xlane.f32.xlu0 %v674
        %v676 = vpop.xlane.xlu0 %675
        %v677 = vsub.f32 %v672, %v676
        %v678 = vmul.f32 %v677, 1.442695
        %v679 = vpow.pop %v678
        %v680 = vsel %vm462, %v679, 0.0
        %681 = vadd.xlane.f32.xlu0 %v680
        %v682 = vpop.xlane.xlu0 %681
        %v683 = vrcp.pop %v682
        %v684 = vmul.f32 %v679, %v683
        %v686 = vsel %vm462, %v684, 0
        %688 = vmatpush.msra.mxu0 0.0
        %689 = vmatpush.msra.mxu0 0.0
        %690 = vmatpush.msra.mxu0 0.0
        %691 = vmatpush.msra.mxu0 0.0
        %692 = vmatpush.msra.mxu0 0.0
        %693 = vmatpush.msra.mxu0 0.0
        %694 = vmatpush.msra.mxu0 0.0
        %695 = vmatpush.msra.mxu0 0.0
        %696 = vmatpush.msra.mxu0 0.0
        %697 = vmatpush.msra.mxu0 0.0
        %698 = vmatpush.msra.mxu0 0.0
        %699 = vmatpush.msra.mxu0 0.0
        %700 = vmatpush.msra.mxu0 0.0
        %701 = vmatpush.msra.mxu0 0.0
        %702 = vmatpush.msra.mxu0 0.0
        %703 = vmatpush.msra.mxu0 %v647
        %704 = vmatmul.f32.gmra.mxu0 %v686
        %v705 = vpop.f32.mrf.mxu0
        %v706 = vadd.f32 0.0, %v705
        %707 = vdwg.mxu0
        %709 = vrot.lane.b32.xlu0 %v706, 16
        %v710 = vpop.permute.xlu0 %709
        %vm712 = vcmask 195712
        %713 = vst.msk [vmem:[#allocation4] sm:$0xff] %vm712, %v710
        %s714 = scalar_lea.vmem %s1, 96
        %v715 = vld [vmem:[%s714] sm:$0xff]
        %v716 = vld [vmem:[%s714 + $0x8] sm:$0xff]
        %v717 = vld [vmem:[%s714 + $0x10] sm:$0xff]
        %v718 = vld [vmem:[%s714 + $0x18] sm:$0xff]
        %719 = vmatpush.msra.mxu0 0.0
        %720 = vmatpush.msra.mxu0 0.0
        %721 = vmatpush.msra.mxu0 0.0
        %722 = vmatpush.msra.mxu0 0.0
        %723 = vmatpush.msra.mxu0 0.0
        %724 = vmatpush.msra.mxu0 0.0
        %725 = vmatpush.msra.mxu0 0.0
        %726 = vmatpush.msra.mxu0 0.0
        %727 = vmatpush.msra.mxu0 0.0
        %728 = vmatpush.msra.mxu0 0.0
        %729 = vmatpush.msra.mxu0 0.0
        %730 = vmatpush.msra.mxu0 0.0
        %731 = vmatpush.msra.mxu0 %v718
        %732 = vmatpush.msra.mxu0 %v717
        %733 = vmatpush.msra.mxu0 %v716
        %734 = vmatpush.msra.mxu0 %v715
        %735 = vmatmul.f32.gmra.mxu0 %v438
        %v736 = vpop.f32.mrf.mxu0
        %v737 = vadd.f32 0.0, %v736
        %738 = vdwg.mxu0
        %s739 = scalar_lea.vmem [#allocation2], 24
        %v740 = vld [vmem:[%s739] sm:$0xff]
        %s741 = scalar_lea.vmem [#allocation3], 24
        %v742 = vld [vmem:[%s741] sm:$0xff]
        %v744 = vsel %vm462, %v737, 0
        %v747 = vsel %vm462, %v740, 0
        %749 = vmatpush.xpose.msra.mxu0 0.0
        %750 = vmatpush.xpose.msra.mxu0 0.0
        %751 = vmatpush.xpose.msra.mxu0 0.0
        %752 = vmatpush.xpose.msra.mxu0 0.0
        %753 = vmatpush.xpose.msra.mxu0 0.0
        %754 = vmatpush.xpose.msra.mxu0 0.0
        %755 = vmatpush.xpose.msra.mxu0 0.0
        %756 = vmatpush.xpose.msra.mxu0 0.0
        %757 = vmatpush.xpose.msra.mxu0 0.0
        %758 = vmatpush.xpose.msra.mxu0 0.0
        %759 = vmatpush.xpose.msra.mxu0 0.0
        %760 = vmatpush.xpose.msra.mxu0 0.0
        %761 = vmatpush.xpose.msra.mxu0 0.0
        %762 = vmatpush.xpose.msra.mxu0 0.0
        %763 = vmatpush.xpose.msra.mxu0 0.0
        %764 = vmatpush.xpose.msra.mxu0 %v747
        %765 = vmatmul.f32.gmra.mxu0 %v744
        %v766 = vpop.f32.mrf.mxu0
        %v767 = vadd.f32 0.0, %v766
        %768 = vdwg.mxu0
        %v769 = vsel %vm462, %v767, -inf
        %770 = vmax.xlane.f32.xlu0 %v769
        %v771 = vpop.xlane.xlu0 %770
        %v772 = vsub.f32 %v767, %v771
        %v773 = vmul.f32 %v772, 1.442695
        %v774 = vpow.pop %v773
        %v775 = vsel %vm462, %v774, 0.0
        %776 = vadd.xlane.f32.xlu0 %v775
        %v777 = vpop.xlane.xlu0 %776
        %v778 = vrcp.pop %v777
        %v779 = vmul.f32 %v774, %v778
        %v781 = vsel %vm462, %v779, 0
        %783 = vmatpush.msra.mxu0 0.0
        %784 = vmatpush.msra.mxu0 0.0
        %785 = vmatpush.msra.mxu0 0.0
        %786 = vmatpush.msra.mxu0 0.0
        %787 = vmatpush.msra.mxu0 0.0
        %788 = vmatpush.msra.mxu0 0.0
        %789 = vmatpush.msra.mxu0 0.0
        %790 = vmatpush.msra.mxu0 0.0
        %791 = vmatpush.msra.mxu0 0.0
        %792 = vmatpush.msra.mxu0 0.0
        %793 = vmatpush.msra.mxu0 0.0
        %794 = vmatpush.msra.mxu0 0.0
        %795 = vmatpush.msra.mxu0 0.0
        %796 = vmatpush.msra.mxu0 0.0
        %797 = vmatpush.msra.mxu0 0.0
        %798 = vmatpush.msra.mxu0 %v742
        %799 = vmatmul.f32.gmra.mxu0 %v781
        %v800 = vpop.f32.mrf.mxu0
        %v801 = vadd.f32 0.0, %v800
        %802 = vdwg.mxu0
        %804 = vrot.lane.b32.xlu0 %v801, 24
        %v805 = vpop.permute.xlu0 %804
        %vm807 = vcmask 261312
        %808 = vst.msk [vmem:[#allocation4] sm:$0xff] %vm807, %v805
        %v809 = vld [vmem:[#allocation4] sm:$0xff]
        %810 = vst.msk [vmem:[%s202] sm:$0xff] %vm436, %v809
        %s811 = sand.u32 %s129, 1
        %s812 = scalar_lea.sflag [#allocation6], %s811
        %s813 = sand.u32 %s129, 1
        %s814 = smul.addr %s813, 8
        %s815 = scalar_lea.vmem [#allocation5], %s814
        // Predicated region
        $region41: #{tpu_custom_call.1} parent=35 // pred_check
          %p816 = pneg %p139
        $region42: #{tpu_custom_call.1} parent=35 // pred_check_branch
          %818 = sbr.rel (%p816) target = $region44
        $region43: #{tpu_custom_call.1} parent=35 // pred_region
          %820 = vsyncadd %s812, 0
          %s821 = sadd.s32 %s23, %s22
          %s822 = smul.addr %s821, 8
          %s823 = scalar_lea.hbm %s4, %s822
          %s825 = sshll.u32 %s815, 4
          %s826 = int_to_ptr.vmem [resolvable:$true] %s825
          %s827 = sshll.u32 %s823, 4
          %s828 = int_to_ptr.hbm [resolvable:$true] %s827
          %830 = dma.vmem_to_hbm [thread:$0]  %s826, 128, %s828, %s812
        $region44: #{tpu_custom_call.1} parent=35 // pred_fallthru
          _
      $region36: #{tpu_custom_call.1} parent=5 // pred_fallthru
        _
      %p831 = scmp.le.s32.totalorder 2, %s13
      // Predicated region
      $region45: #{tpu_custom_call.1} parent=5 // pred_check
        %p832 = pneg %p831
      $region46: #{tpu_custom_call.1} parent=5 // pred_check_branch
        %834 = sbr.rel (%p832) target = $region48
      $region47: #{tpu_custom_call.1} parent=5 // pred_region
        %s835 = ssub.s32 %s13, 2
        // Predicated region
        $region49: #{tpu_custom_call.1} parent=47 // pred_check
          %p836 = pneg %p145
        $region50: #{tpu_custom_call.1} parent=47 // pred_check_branch
          %838 = sbr.rel (%p836) target = $region52
        $region51: #{tpu_custom_call.1} parent=47 // pred_region
          %s839 = sand.u32 %s130, 1
          %s840 = scalar_lea.sflag [#allocation6], %s839
          %s841 = sand.u32 %s130, 1
          %s842 = smul.addr %s841, 8
          %s843 = scalar_lea.vmem [#allocation5], %s842
          %845 = dma.done %s840, 128
        $region52: #{tpu_custom_call.1} parent=47 // pred_fallthru
          _
      $region48: #{tpu_custom_call.1} parent=5 // pred_fallthru
        _
    $region6: #{tpu_custom_call.1} parent=1 // loop_footer
      %s17 = sadd.s32 1, %s13
    $region7: #{tpu_custom_call.1} parent=1 // loop_footer_branch
      %12 = sbr.rel target = $region3
    $region8: #{tpu_custom_call.1} parent=1 // loop_exit
      _
    %846 = vsyncpa [#allocation6], 1
    %s847 = scalar_lea.sflag [#allocation6], 1
    %848 = vsyncpa %s847, 1

</llo_original>
